<compile_context>
chip_gen: v5e
topology: v5e:2x2
jax: 0.10.0
libtpu: 0.0.40
codegen_flags: <defaults>
</compile_context>

<pallas_src>
import jax
import jax.numpy as jnp
from jax.experimental import pallas as pl
from jax.experimental.pallas import tpu as pltpu


def _round_up(x: int, m: int) -> int:
    return ((x + m - 1) // m) * m


# --------------------------------------------------------------------------
# Kernel 1: per-face normals + areas (1-D grid over F tiles).
# --------------------------------------------------------------------------
def _make_face_kernel(B: int):
    CB = 3 * B  # rows per corner: (coord, batch) component-major

    def kernel(c_ref, fn_ref, a_ref):
        # c_ref  : (9*B, TF)  packed corners, row = (corner*3 + coord)*B + b
        # fn_ref : (3*B, TF)  face normals, row = coord*B + b
        # a_ref  : (B, TF)    per-face areas
        c = c_ref[...]
        v0 = c[0:CB, :]
        v1 = c[CB:2 * CB, :]
        v2 = c[2 * CB:3 * CB, :]

        e1 = v1 - v0
        e2 = v2 - v1
        e1x, e1y, e1z = e1[0:B, :], e1[B:2 * B, :], e1[2 * B:3 * B, :]
        e2x, e2y, e2z = e2[0:B, :], e2[B:2 * B, :], e2[2 * B:3 * B, :]

        fnx = e1y * e2z - e1z * e2y          # (B, TF)
        fny = e1z * e2x - e1x * e2z
        fnz = e1x * e2y - e1y * e2x

        fn_ref[0:B, :] = fnx
        fn_ref[B:2 * B, :] = fny
        fn_ref[2 * B:3 * B, :] = fnz
        a_ref[...] = jnp.sqrt(fnx * fnx + fny * fny + fnz * fnz) * 0.5

    return kernel


# --------------------------------------------------------------------------
# Kernel 2: scatter-add of face normals onto vertices == incidence matmul,
# then normalize.  Grid = (V tiles ["parallel"], F tiles ["arbitrary"]).
# --------------------------------------------------------------------------
def _make_scatter_kernel(B: int):
    def kernel(fn_ref, mt_ref, n_ref, acc_ref):
        # fn_ref : (3*B, TF)  face normals (coord-major rows)
        # mt_ref : (TF, TV)   int8 incidence tile mt[f, v]
        # n_ref  : (3*B, TV)  normalized vertex normals
        # acc_ref: (3*B, TV)  f32 accumulator, resident across the F axis
        f_id = pl.program_id(1)

        @pl.when(f_id == 0)
        def _init():
            acc_ref[...] = jnp.zeros_like(acc_ref)

        mt = mt_ref[...].astype(jnp.float32)                  # (TF, TV)
        acc_ref[...] += jnp.dot(fn_ref[...], mt,
                                preferred_element_type=jnp.float32)

        @pl.when(f_id == pl.num_programs(1) - 1)
        def _finalize():
            acc = acc_ref[...]                                # (3B, TV)
            ax = acc[0:B, :]
            ay = acc[B:2 * B, :]
            az = acc[2 * B:3 * B, :]
            # normalize(..., eps=1e-6): v / max(||v||, 1e-6)
            #   == v * rsqrt(max(||v||^2, 1e-12))
            inv = jax.lax.rsqrt(jnp.maximum(ax * ax + ay * ay + az * az, 1e-12))
            n_ref[0:B, :] = ax * inv
            n_ref[B:2 * B, :] = ay * inv
            n_ref[2 * B:3 * B, :] = az * inv

    return kernel


# --------------------------------------------------------------------------
# Wrapper (mirrors MeshVertexNormals.forward).
# --------------------------------------------------------------------------
def mesh_vertex_normals(vertices: jnp.ndarray, faces: jnp.ndarray, *,
                        tile_v: int = 1024, tile_f: int = 1024):
    """vertices: (B, V, 3) f32; faces: (F, 3) int (extra singleton dims OK)."""
    faces = jnp.squeeze(faces)                       # mirrors torch faces.squeeze()
    if faces.ndim == 1:                              # degenerate single-face mesh
        faces = faces.reshape(1, 3)
    B, V, _ = vertices.shape
    F = faces.shape[0]

    # ---- tile / padding choices (lane-dense, multiples of 128) -------------
    V128 = _round_up(V, 128)
    F128 = _round_up(F, 128)
    # Megacore: keep >= 2 V tiles whenever possible (V is the only "parallel"
    # axis; v7x has 2 TensorCores sharded along it).
    if V128 >= 256:
        TV = min(tile_v, _round_up(pl.cdiv(V128, 2), 128))
    else:
        TV = V128
    TF = min(tile_f, F128)
    V_pad = _round_up(V128, TV)
    F_pad = _round_up(F128, TF)

    # ---- glue: gather the three corners of every face, pack component-major
    vf = vertices[:, faces]                                   # (B, F, 3, 3)
    # (corner, coord, B, F) -> (9*B, F), row = (corner*3 + coord)*B + b
    corners = jnp.transpose(vf, (2, 3, 0, 1)).reshape(9 * B, F)
    corners = jnp.pad(corners, ((0, 0), (0, F_pad - F)))

    # ---- glue: int8 incidence matrix mt[f, v] = #occurrences of v in face f
    face_rows = jnp.broadcast_to(
        jnp.arange(F, dtype=jnp.int32)[:, None], (F, 3)).reshape(-1)
    mt = jnp.zeros((F_pad, V_pad), jnp.int8).at[
        face_rows, faces.reshape(-1)].add(jnp.int8(1))

    # ---- kernel 1: face normals + areas (corners read exactly once) --------
    fn_slab, areas = pl.pallas_call(
        _make_face_kernel(B),
        out_shape=(
            jax.ShapeDtypeStruct((3 * B, F_pad), jnp.float32),
            jax.ShapeDtypeStruct((B, F_pad), jnp.float32),
        ),
        grid_spec=pltpu.PrefetchScalarGridSpec(
            num_scalar_prefetch=0,
            grid=(F_pad // TF,),
            in_specs=[pl.BlockSpec((9 * B, TF), lambda f: (0, f))],
            out_specs=[
                pl.BlockSpec((3 * B, TF), lambda f: (0, f)),
                pl.BlockSpec((B, TF), lambda f: (0, f)),
            ],
        ),
        compiler_params=pltpu.CompilerParams(
            dimension_semantics=("parallel",)),
    )(corners)

    # ---- kernel 2: incidence matmul + normalize -----------------------------
    # VMEM budget: double-buffered fn/mt/out + accumulator + f32-widened mt
    # compute temps + slack; covers tiles well beyond the 1024^2 default.
    vmem_bytes = int(
        2 * 12 * B * TF          # fn input, double-buffered (f32)
        + 2 * TF * TV            # int8 mt, double-buffered
        + 2 * 12 * B * TV        # normals output, double-buffered
        + 12 * B * TV            # accumulator scratch
        + 8 * TF * TV            # f32-widened mt + compute-temp headroom
        + (4 << 20))             # misc slack
    vmem_bytes = min(vmem_bytes, 100 * 1024 * 1024)

    normals_cm = pl.pallas_call(
        _make_scatter_kernel(B),
        out_shape=jax.ShapeDtypeStruct((3 * B, V_pad), jnp.float32),
        grid_spec=pltpu.PrefetchScalarGridSpec(
            num_scalar_prefetch=0,
            grid=(V_pad // TV, F_pad // TF),
            in_specs=[
                pl.BlockSpec((3 * B, TF), lambda v, f: (0, f)),   # face normals
                pl.BlockSpec((TF, TV), lambda v, f: (f, v)),      # incidence
            ],
            out_specs=pl.BlockSpec((3 * B, TV), lambda v, f: (0, v)),
            scratch_shapes=[pltpu.VMEM((3 * B, TV), jnp.float32)],
        ),
        compiler_params=pltpu.CompilerParams(
            dimension_semantics=("parallel", "arbitrary"),
            vmem_limit_bytes=vmem_bytes),
    )(fn_slab, mt)

    # (3B, V_pad) with row = coord*B + b  ->  (B, V, 3)
    vectors = jnp.transpose(normals_cm.reshape(3, B, V_pad), (1, 2, 0))[:, :V, :]
    return {"vectors": vectors, "areas": areas[:, :F]}


# --------------------------------------------------------------------------
# Pure-JAX reference mirroring the PyTorch module, and self-check.
# --------------------------------------------------------------------------
def _reference(vertices, faces):
    faces = jnp.squeeze(faces)
    if faces.ndim == 1:
        faces = faces.reshape(1, 3)
    vf = vertices[:, faces]                                   # (B, F, 3, 3)
    fn = jnp.cross(vf[..., 1, :] - vf[..., 0, :],
                   vf[..., 2, :] - vf[..., 1, :], axis=-1)    # (B, F, 3)
    vn = jnp.zeros_like(vertices)
    for k in range(3):
        vn = vn.at[:, faces[:, k]].add(fn)
    norm = jnp.linalg.norm(vn, axis=-1, keepdims=True)
    vectors = vn / jnp.maximum(norm, 1e-6)
    areas = jnp.abs(jnp.linalg.norm(fn, axis=-1) * 0.5)
    return {"vectors": vectors, "areas": areas}


def _check(vertices, faces, **kw):
    out = mesh_vertex_normals(vertices, faces, **kw)
    jax.block_until_ready(out)
    ref = _reference(vertices, faces)
    assert out["vectors"].shape == ref["vectors"].shape
    assert out["areas"].shape == ref["areas"].shape
    assert jnp.allclose(out["vectors"], ref["vectors"], atol=1e-4, rtol=1e-4)
    assert jnp.allclose(out["areas"], ref["areas"], atol=1e-4, rtol=1e-4)


if __name__ == "__main__":
    key = jax.random.PRNGKey(0)
    kv, kf, kv2, kf2, kv3, kf3 = jax.random.split(key, 6)

    # small shape (single tile, default tile sizes)
    B, V, F = 2, 32, 64
    vertices = jax.random.normal(kv, (B, V, 3), dtype=jnp.float32)
    faces = jax.random.randint(kf, (F, 3), 0, V, dtype=jnp.int32)
    _check(vertices, faces)

    # multi-tile path: exercises F-reduction accumulation, multiple V tiles
    # and padding (scatter grid = (3, 4) with 128x128 tiles)
    B2, V2, F2 = 1, 300, 500
    vertices2 = jax.random.normal(kv2, (B2, V2, 3), dtype=jnp.float32)
    faces2 = jax.random.randint(kf2, (F2, 3), 0, V2, dtype=jnp.int32)
    _check(vertices2, faces2, tile_v=128, tile_f=128)

    # default-tile path with the megacore TV cap active (2 V tiles, 3 F tiles)
    B3, V3, F3 = 1, 1500, 3000
    vertices3 = jax.random.normal(kv3, (B3, V3, 3), dtype=jnp.float32)
    faces3 = jax.random.randint(kf3, (F3, 3), 0, V3, dtype=jnp.int32)
    _check(vertices3, faces3)

    print("KERNEL_OK")
</pallas_src>

<mosaic_0001>
module attributes {stable_mosaic.version = 11 : i64} {
  func.func @kernel(%arg0: i32, %arg1: memref<18x128xf32, #tpu.memory_space<vmem>>, %arg2: memref<6x128xf32, #tpu.memory_space<vmem>>, %arg3: memref<2x128xf32, #tpu.memory_space<vmem>>) attributes {dimension_semantics = [#tpu.dimension_semantics<parallel>], iteration_bounds = array<i64: 1>, scalar_prefetch = 0 : i64, scratch_operands = 0 : i64, tpu.core_type = #tpu.core_type<tc>, window_params = [{transform_indices = @transform_0, window_bounds = array<i64: 18, 128>}, {transform_indices = @transform_1, window_bounds = array<i64: 6, 128>}, {transform_indices = @transform_2, window_bounds = array<i64: 2, 128>}]} {
    %c0 = arith.constant 0 : index
    %c0_0 = arith.constant 0 : index
    %0 = vector.load %arg1[%c0, %c0_0] : memref<18x128xf32, #tpu.memory_space<vmem>>, vector<18x128xf32>
    %1 = vector.extract_strided_slice %0 {offsets = [0, 0], sizes = [6, 128], strides = [1, 1]} : vector<18x128xf32> to vector<6x128xf32>
    %2 = vector.extract_strided_slice %0 {offsets = [6, 0], sizes = [6, 128], strides = [1, 1]} : vector<18x128xf32> to vector<6x128xf32>
    %3 = vector.extract_strided_slice %0 {offsets = [12, 0], sizes = [6, 128], strides = [1, 1]} : vector<18x128xf32> to vector<6x128xf32>
    %4 = arith.subf %2, %1 : vector<6x128xf32>
    %5 = arith.subf %3, %2 : vector<6x128xf32>
    %6 = vector.extract_strided_slice %4 {offsets = [0, 0], sizes = [2, 128], strides = [1, 1]} : vector<6x128xf32> to vector<2x128xf32>
    %7 = vector.extract_strided_slice %4 {offsets = [2, 0], sizes = [2, 128], strides = [1, 1]} : vector<6x128xf32> to vector<2x128xf32>
    %8 = vector.extract_strided_slice %4 {offsets = [4, 0], sizes = [2, 128], strides = [1, 1]} : vector<6x128xf32> to vector<2x128xf32>
    %9 = vector.extract_strided_slice %5 {offsets = [0, 0], sizes = [2, 128], strides = [1, 1]} : vector<6x128xf32> to vector<2x128xf32>
    %10 = vector.extract_strided_slice %5 {offsets = [2, 0], sizes = [2, 128], strides = [1, 1]} : vector<6x128xf32> to vector<2x128xf32>
    %11 = vector.extract_strided_slice %5 {offsets = [4, 0], sizes = [2, 128], strides = [1, 1]} : vector<6x128xf32> to vector<2x128xf32>
    %12 = arith.mulf %7, %11 : vector<2x128xf32>
    %13 = arith.mulf %8, %10 : vector<2x128xf32>
    %14 = arith.subf %12, %13 : vector<2x128xf32>
    %15 = arith.mulf %8, %9 : vector<2x128xf32>
    %16 = arith.mulf %6, %11 : vector<2x128xf32>
    %17 = arith.subf %15, %16 : vector<2x128xf32>
    %18 = arith.mulf %6, %10 : vector<2x128xf32>
    %19 = arith.mulf %7, %9 : vector<2x128xf32>
    %20 = arith.subf %18, %19 : vector<2x128xf32>
    %c0_1 = arith.constant 0 : index
    %c0_2 = arith.constant 0 : index
    %21 = vector.load %arg2[%c0_1, %c0_2] : memref<6x128xf32, #tpu.memory_space<vmem>>, vector<2x128xf32>
    tpu.vector_store %arg2[%c0_1, %c0_2], %14 {strides = array<i32>} : memref<6x128xf32, #tpu.memory_space<vmem>>, vector<2x128xf32>,
    %c2 = arith.constant 2 : index
    %c0_3 = arith.constant 0 : index
    %22 = vector.load %arg2[%c2, %c0_3] : memref<6x128xf32, #tpu.memory_space<vmem>>, vector<2x128xf32>
    tpu.vector_store %arg2[%c2, %c0_3], %17 {strides = array<i32>} : memref<6x128xf32, #tpu.memory_space<vmem>>, vector<2x128xf32>,
    %c4 = arith.constant 4 : index
    %c0_4 = arith.constant 0 : index
    %23 = vector.load %arg2[%c4, %c0_4] : memref<6x128xf32, #tpu.memory_space<vmem>>, vector<2x128xf32>
    tpu.vector_store %arg2[%c4, %c0_4], %20 {strides = array<i32>} : memref<6x128xf32, #tpu.memory_space<vmem>>, vector<2x128xf32>,
    %24 = arith.mulf %14, %14 : vector<2x128xf32>
    %25 = arith.mulf %17, %17 : vector<2x128xf32>
    %26 = arith.addf %24, %25 : vector<2x128xf32>
    %27 = arith.mulf %20, %20 : vector<2x128xf32>
    %28 = arith.addf %26, %27 : vector<2x128xf32>
    %29 = math.sqrt %28 : vector<2x128xf32>
    %cst = arith.constant 5.000000e-01 : f32
    %30 = vector.broadcast %cst : f32 to vector<2x128xf32>
    %31 = arith.mulf %29, %30 : vector<2x128xf32>
    %c0_5 = arith.constant 0 : index
    %c0_6 = arith.constant 0 : index
    %32 = vector.load %arg3[%c0_5, %c0_6] : memref<2x128xf32, #tpu.memory_space<vmem>>, vector<2x128xf32>
    tpu.vector_store %arg3[%c0_5, %c0_6], %31 {strides = array<i32>} : memref<2x128xf32, #tpu.memory_space<vmem>>, vector<2x128xf32>,
    return
  }
  func.func @transform_0(%arg0: i32) -> (i32, i32) {
    %c0_i32 = arith.constant 0 : i32
    %c0_i32_0 = arith.constant 0 : i32
    return %c0_i32, %arg0 : i32, i32
  }
  func.func @transform_1(%arg0: i32) -> (i32, i32) {
    %c0_i32 = arith.constant 0 : i32
    %c0_i32_0 = arith.constant 0 : i32
    return %c0_i32, %arg0 : i32, i32
  }
  func.func @transform_2(%arg0: i32) -> (i32, i32) {
    %c0_i32 = arith.constant 0 : i32
    %c0_i32_0 = arith.constant 0 : i32
    return %c0_i32, %arg0 : i32, i32
  }
}

</mosaic_0001>

<llo_original>
// kernel: tpu_custom_call.1
$region0: #{tpu_custom_call.1}
  #allocation0 [shape = 'u32[]', space=smem, size = 0x4, offset = 0x4, fixed_abs, tag = 'smem constant byte address 0x4 - core index']
  #allocation1 [shape = 'u32[72,128]{1,0:T(1,128)}', space=vmem, size = 0x9000, scoped, tag = 'internal scratch']
  %s0 = inlined_call_operand.hbm [shape: f32[18,128], index: 0, kind: input, shape index: {}]
  %s1 = inlined_call_operand.hbm [shape: f32[6,128], index: 1, kind: output, shape index: {0}]
  %s2 = inlined_call_operand.hbm [shape: f32[2,128], index: 2, kind: output, shape index: {1}]
  %3 = xla_tuple %s1, %s2
  %s4 = sld [smem:[#allocation0]]
  $region26: #{tpu_custom_call.1} parent=0
    _
  %s6 = ssub.s32 1, %s4
  %s7 = scalar_select 0, %s6, %s4
  $region1: #{tpu_custom_call.1} parent=0
    #allocation2 [shape = 'u8[12288]{0}', space=vmem, size = 0x3000, scoped, tag = 'input window, operand 0, single buffered']
    #allocation3 [shape = 's32[1]{0}', space=sflag, size = 0x4, scoped, tag = 'scoped memory for tpu_custom_call.1']
    #allocation4 [shape = 's32[1]{0}', space=sflag, size = 0x4, scoped, tag = 'scoped memory for tpu_custom_call.1']
    #allocation5 [shape = 'u8[4096]{0}', space=vmem, size = 0x1000, scoped, tag = 'output window, operand 0, single buffered']
    #allocation6 [shape = 'u8[1024]{0}', space=vmem, size = 0x400, scoped, tag = 'output window, operand 1, single buffered']
    #allocation7 [shape = 's32[1]{0}', space=sflag, size = 0x4, scoped, tag = 'scoped memory for tpu_custom_call.1']
    %8 = vsyncpa [#allocation3], 0
    %9 = vsyncpa [#allocation4], 0
    %10 = vsyncpa [#allocation7], 0
    // Predicated region
    $region2: #{tpu_custom_call.1} parent=1 // pred_check
      _
    $region3: #{tpu_custom_call.1} parent=1 // pred_check_branch
      %12 = sbr.rel (0) target = $region5
    $region4: #{tpu_custom_call.1} parent=1 // pred_region
      %14 = vsyncadd [#allocation3], 0
      %s15 = sshll.u32 %s0, 4
      %s16 = int_to_ptr.hbm [resolvable:$true] %s15
      %s17 = sshll.u32 [#allocation2], 4
      %s18 = int_to_ptr.vmem [resolvable:$true] %s17
      %23 = dma.hbm_to_vmem [thread:$0]  %s16, 384, %s18, [#allocation3], 128, 128, 8
    $region5: #{tpu_custom_call.1} parent=1 // pred_fallthru
      _
    // Predicated region
    $region6: #{tpu_custom_call.1} parent=1 // pred_check
      _
    $region7: #{tpu_custom_call.1} parent=1 // pred_check_branch
      %25 = sbr.rel (0) target = $region9
    $region8: #{tpu_custom_call.1} parent=1 // pred_region
      %27 = dma.done [#allocation3], 384
    $region9: #{tpu_custom_call.1} parent=1 // pred_fallthru
      _
    %v28 = vld [vmem:[#allocation2] sm:$0xff]
    %v29 = vld [vmem:[#allocation2 + $0x8] sm:$0xff]
    %v30 = vld [vmem:[#allocation2 + $0x10] sm:$0x3]
    %v32 = vrot.slane %v28, 2
    %v34 = vsub.f32 %v28, %v32
    %v35 = vsub.f32 %v29, %v32
    %vm37 = vcmask 1045504
    %v38 = vrot.slane %v29, 2
    %v39 = vsel %vm37, %v32, %v38
    %v42 = vsub.f32 %v29, %v39
    %v43 = vsub.f32 %v30, %v38
    %v44 = vmul.f32 %v35, %v43
    %v46 = vrot.slane %v42, 4
    %v48 = vmul.f32 %v35, %v46
    %v50 = vrot.slane %v48, 2
    %v52 = vsub.f32 %v44, %v50
    %v53 = vrot.slane %v42, 2
    %v55 = vmul.f32 %v35, %v53
    %v57 = vrot.slane %v43, 2
    %v59 = vmul.f32 %v34, %v57
    %v61 = vrot.slane %v59, 4
    %v63 = vsub.f32 %v55, %v61
    %v64 = vmul.f32 %v34, %v42
    %v65 = vsub.f32 %v64, %v50
    %66 = vst [vmem:[#allocation5] sm:$0x3] %v52
    %67 = vst [vmem:[#allocation5] sm:$0xc] %v63
    %68 = vst [vmem:[#allocation5 - $0x2] sm:$0xc0] %v65
    %v69 = vmul.f32 %v52, %v52
    %v70 = vmul.f32 %v63, %v63
    %v72 = vrot.slane %v70, 2
    %v74 = vadd.f32 %v69, %v72
    %v75 = vmul.f32 %v65, %v65
    %v77 = vrot.slane %v75, 6
    %v79 = vadd.f32 %v74, %v77
    %v80 = vrsqrt.pop %v79
    %v81 = vmul.f32 %v80, %v79
    %v82 = vmul.f32 %v81, %v80
    %v83 = vmul.f32 0.5, %v82
    %v84 = vsub.f32 1.5, %v83
    %v85 = vmul.f32 %v80, %v84
    %v86 = vmul.f32 %v79, %v85
    %vm87 = vcmp.eq.f32.partialorder %v79, inf
    %v88 = vsel %vm87, %v79, %v86
    %vm89 = vcmp.eq.f32.partialorder %v79, 0.0
    %v90 = vand.u32 %v79, 2147483648
    %v91 = vsel %vm89, %v90, %v88
    %v92 = vmul.f32 %v91, 0.5
    %93 = vst [vmem:[#allocation6] sm:$0x3] %v92
    // Predicated region
    $region10: #{tpu_custom_call.1} parent=1 // pred_check
      _
    $region11: #{tpu_custom_call.1} parent=1 // pred_check_branch
      %95 = sbr.rel (0) target = $region13
    $region12: #{tpu_custom_call.1} parent=1 // pred_region
      %97 = vsyncadd [#allocation4], 0
      %s99 = sshll.u32 [#allocation5], 4
      %s100 = int_to_ptr.vmem [resolvable:$true] %s99
      %s101 = sshll.u32 %s1, 4
      %s102 = int_to_ptr.hbm [resolvable:$true] %s101
      %104 = dma.vmem_to_hbm [thread:$0]  %s100, 128, %s102, [#allocation4]
    $region13: #{tpu_custom_call.1} parent=1 // pred_fallthru
      _
    // Predicated region
    $region14: #{tpu_custom_call.1} parent=1 // pred_check
      _
    $region15: #{tpu_custom_call.1} parent=1 // pred_check_branch
      %106 = sbr.rel (0) target = $region17
    $region16: #{tpu_custom_call.1} parent=1 // pred_region
      %108 = vsyncadd [#allocation7], 0
      %s110 = sshll.u32 [#allocation6], 4
      %s111 = int_to_ptr.vmem [resolvable:$true] %s110
      %s112 = sshll.u32 %s2, 4
      %s113 = int_to_ptr.hbm [resolvable:$true] %s112
      %115 = dma.vmem_to_hbm [thread:$0]  %s111, 32, %s113, [#allocation7]
    $region17: #{tpu_custom_call.1} parent=1 // pred_fallthru
      _
    // Predicated region
    $region18: #{tpu_custom_call.1} parent=1 // pred_check
      _
    $region19: #{tpu_custom_call.1} parent=1 // pred_check_branch
      %117 = sbr.rel (0) target = $region21
    $region20: #{tpu_custom_call.1} parent=1 // pred_region
      %119 = dma.done [#allocation4], 128
    $region21: #{tpu_custom_call.1} parent=1 // pred_fallthru
      _
    // Predicated region
    $region22: #{tpu_custom_call.1} parent=1 // pred_check
      _
    $region23: #{tpu_custom_call.1} parent=1 // pred_check_branch
      %121 = sbr.rel (0) target = $region25
    $region24: #{tpu_custom_call.1} parent=1 // pred_region
      %123 = dma.done [#allocation7], 32
    $region25: #{tpu_custom_call.1} parent=1 // pred_fallthru
      _
    %124 = vsyncpa [#allocation3], 1
    %125 = vsyncpa [#allocation4], 1
    %126 = vsyncpa [#allocation7], 1

</llo_original>
